<compile_context>
chip_gen: v5e
topology: v5e:2x2
jax: 0.10.0
libtpu: 0.0.40
codegen_flags: <defaults>
</compile_context>

<pallas_src>
import functools
import math

import jax
import jax.numpy as jnp
from jax.experimental import pallas as pl
from jax.experimental.pallas import tpu as pltpu

_LANE = 128
_SUBLANE = 8


def _round_up(x, m):
    return (x + m - 1) // m * m


def _discriminator_kernel(x_ref, w1_ref, b1_ref, w2_ref, b2_ref,
                          rep_ref, logits_ref):
    # x_ref:  [TB, Dp] bf16   w1_ref: [Dp, Hp] bf16   b1_ref: [1, Hp] f32
    # w2_ref: [Hp, Cp] bf16   b2_ref: [1, Cp] f32
    # rep_ref: [TB, Hp] bf16  logits_ref: [TB, Cp] f32

    # Hidden layer: bf16 MXU matmul with f32 accumulation, bias, LeakyReLU(0.2).
    h = jnp.dot(x_ref[...], w1_ref[...], preferred_element_type=jnp.float32)
    h = h + b1_ref[...]
    h = jnp.maximum(h, 0.2 * h)          # LeakyReLU(0.2): one VALU op

    # Store the representation in bf16 (dominant HBM write) and reuse the same
    # rounded values for the logit matmul so rep/logits are consistent.
    h_low = h.astype(rep_ref.dtype)
    rep_ref[...] = h_low

    logits = jnp.dot(h_low, w2_ref[...], preferred_element_type=jnp.float32)
    logits_ref[...] = logits + b2_ref[...]


@functools.partial(jax.jit, static_argnames=("block_b",))
def discriminator_forward(x, w1_t, b1, w2_t, b2, *, block_b=1024):
    """x: [B, D]; w1_t: [D, H]; b1: [1, H]; w2_t: [H, C]; b2: [1, C].

    Weights are passed pre-transposed ([in, out]) so the kernel computes x @ W.
    Returns (last_rep [B,H] bf16, logits [B,C] f32, probs [B,C] f32).
    """
    B, D = x.shape
    H = w1_t.shape[1]
    C = w2_t.shape[1]

    dp = _round_up(D, _LANE)
    hp = _round_up(H, _LANE)
    cp = _round_up(C, _LANE)

    # ---- generation-aware VMEM budget ------------------------------------
    try:
        vmem_phys = pltpu.get_tpu_info().vmem_capacity_bytes
    except Exception:
        vmem_phys = 64 * 1024 * 1024          # conservative: v7x per-TC VMEM
    vmem_cap = int(0.75 * vmem_phys)

    # ---- batch tile selection ---------------------------------------------
    # Target ~block_b rows/tile, minimise padded remainder, and force >= 2 grid
    # steps when B allows so the "parallel" axis spans both TCs on v7x.
    n_steps = max(1, -(-B // block_b))
    if n_steps == 1 and B >= 2 * _SUBLANE:
        n_steps = 2
    tb = _round_up(-(-B // n_steps), _SUBLANE)

    # bf16 weights (x2 buffers: resident blocks are still double-buffered) +
    # f32 biases (sublane-padded) + double-buffered per-tile I/O + headroom.
    weight_bytes = (dp * hp + hp * cp) * 2 + 8 * (hp + cp) * 4

    def footprint(tb_):
        tile_bytes = tb_ * (dp * 2 + hp * 2 + cp * 4)   # x bf16, rep bf16, logits f32
        return 2 * (tile_bytes + weight_bytes) + 2 * 1024 * 1024

    while footprint(tb) > vmem_cap and tb > _SUBLANE:
        tb = _round_up(max(_SUBLANE, tb // 2), _SUBLANE)

    bp = _round_up(B, tb)
    n_b = bp // tb
    vmem_bytes = int(min(vmem_cap,
                         max(footprint(tb) + 6 * 1024 * 1024, 32 * 1024 * 1024)))

    # ---- pad to lane/sublane multiples (bf16 data path, f32 biases) --------
    cd = jnp.bfloat16
    x_p = jnp.pad(x.astype(cd), ((0, bp - B), (0, dp - D)))
    w1_p = jnp.pad(w1_t.astype(cd), ((0, dp - D), (0, hp - H)))
    b1_p = jnp.pad(b1.astype(jnp.float32), ((0, 0), (0, hp - H)))
    w2_p = jnp.pad(w2_t.astype(cd), ((0, hp - H), (0, cp - C)))
    b2_p = jnp.pad(b2.astype(jnp.float32), ((0, 0), (0, cp - C)))

    cost = pl.CostEstimate(
        flops=2 * bp * (dp * hp + hp * cp),
        transcendentals=0,
        bytes_accessed=(bp * dp * 2 + (dp * hp + hp * cp) * 2 + (hp + cp) * 4
                        + bp * hp * 2 + bp * cp * 4),
    )

    rep_p, logits_p = pl.pallas_call(
        _discriminator_kernel,
        out_shape=(
            jax.ShapeDtypeStruct((bp, hp), cd),           # last_rep (bf16)
            jax.ShapeDtypeStruct((bp, cp), jnp.float32),  # logits
        ),
        grid=(n_b,),
        in_specs=[
            pl.BlockSpec((tb, dp), lambda i: (i, 0)),     # x: batch-tiled
            pl.BlockSpec((dp, hp), lambda i: (0, 0)),     # W1: resident
            pl.BlockSpec((1, hp), lambda i: (0, 0)),      # b1: resident
            pl.BlockSpec((hp, cp), lambda i: (0, 0)),     # W2: resident
            pl.BlockSpec((1, cp), lambda i: (0, 0)),      # b2: resident
        ],
        out_specs=(
            pl.BlockSpec((tb, hp), lambda i: (i, 0)),
            pl.BlockSpec((tb, cp), lambda i: (i, 0)),
        ),
        compiler_params=pltpu.CompilerParams(
            dimension_semantics=("parallel",),
            vmem_limit_bytes=vmem_bytes,
        ),
        cost_estimate=cost,
    )(x_p, w1_p, b1_p, w2_p, b2_p)

    # Strip batch / lane padding outside the kernel (lane-dense stores inside).
    last_rep = rep_p[:B, :H]
    logits = logits_p[:B, :C]
    # Tiny (B, C~3) softmax done exactly with XLA on the sliced logits (per
    # perf review): avoids a padded 128-lane probs HBM write from the kernel.
    probs = jax.nn.softmax(logits, axis=-1)
    return last_rep, logits, probs


def _reference_forward(x, w1_t, b1, w2_t, b2):
    hi = jax.lax.Precision.HIGHEST
    h = jnp.dot(x, w1_t, precision=hi) + b1
    h = jnp.where(h > 0, h, 0.2 * h)
    logits = jnp.dot(h, w2_t, precision=hi) + b2
    probs = jax.nn.softmax(logits, axis=-1)
    return h, logits, probs


if __name__ == "__main__":
    # Small shapes consistent with the module: input_size=32, hidden_sizes=[32],
    # num_labels=2 -> logit dim = num_labels + 1 = 3.
    B, D, H, NUM_LABELS = 8, 32, 32, 2
    C = NUM_LABELS + 1

    key = jax.random.PRNGKey(0)
    kx, kw1, kb1, kw2, kb2 = jax.random.split(key, 5)

    x = jax.random.normal(kx, (B, D), dtype=jnp.float32)

    # Deterministic parameter init (uniform, like PyTorch Linear's default scale).
    lim1 = 1.0 / math.sqrt(D)
    lim2 = 1.0 / math.sqrt(H)
    # PyTorch weight is [out, in]; store transposed [in, out] for the kernel.
    w1_t = jax.random.uniform(kw1, (D, H), jnp.float32, -lim1, lim1)
    b1 = jax.random.uniform(kb1, (1, H), jnp.float32, -lim1, lim1)
    w2_t = jax.random.uniform(kw2, (H, C), jnp.float32, -lim2, lim2)
    b2 = jax.random.uniform(kb2, (1, C), jnp.float32, -lim2, lim2)

    last_rep, logits, probs = discriminator_forward(x, w1_t, b1, w2_t, b2)
    jax.block_until_ready((last_rep, logits, probs))

    assert last_rep.shape == (B, H)
    assert logits.shape == (B, C)
    assert probs.shape == (B, C)

    # Reference on the same bf16-rounded inputs (the kernel's compute dtype),
    # so the comparison isolates kernel correctness from input quantization.
    xb = x.astype(jnp.bfloat16).astype(jnp.float32)
    w1b = w1_t.astype(jnp.bfloat16).astype(jnp.float32)
    w2b = w2_t.astype(jnp.bfloat16).astype(jnp.float32)
    ref_rep, ref_logits, ref_probs = _reference_forward(xb, w1b, b1, w2b, b2)

    # rep is stored in bf16 -> bf16-rounding tolerance.
    assert jnp.allclose(last_rep.astype(jnp.float32), ref_rep, atol=2e-2, rtol=2e-2)
    assert jnp.allclose(logits, ref_logits, atol=2e-2, rtol=2e-2)
    assert jnp.allclose(probs, ref_probs, atol=2e-2, rtol=2e-2)
    # Softmax is computed exactly (XLA, f32) on the real class lanes.
    assert jnp.allclose(jnp.sum(probs, axis=-1), 1.0, atol=1e-3)

    print("KERNEL_OK")
</pallas_src>

<mosaic_0001>
module attributes {stable_mosaic.version = 11 : i64} {
  func.func @_discriminator_kernel(%arg0: i32, %arg1: memref<8x128xbf16, #tpu.memory_space<vmem>>, %arg2: memref<128x128xbf16, #tpu.memory_space<vmem>>, %arg3: memref<1x128xf32, #tpu.memory_space<vmem>>, %arg4: memref<128x128xbf16, #tpu.memory_space<vmem>>, %arg5: memref<1x128xf32, #tpu.memory_space<vmem>>, %arg6: memref<8x128xbf16, #tpu.memory_space<vmem>>, %arg7: memref<8x128xf32, #tpu.memory_space<vmem>>) attributes {dimension_semantics = [#tpu.dimension_semantics<parallel>], iteration_bounds = array<i64: 1>, scalar_prefetch = 0 : i64, scratch_operands = 0 : i64, tpu.core_type = #tpu.core_type<tc>, window_params = [{transform_indices = @transform_0, window_bounds = array<i64: 8, 128>}, {pipeline_mode = #tpu.pipeline_mode<synchronous>, transform_indices = @transform_1, window_bounds = array<i64: 128, 128>}, {pipeline_mode = #tpu.pipeline_mode<synchronous>, transform_indices = @transform_2, window_bounds = array<i64: 1, 128>}, {pipeline_mode = #tpu.pipeline_mode<synchronous>, transform_indices = @transform_3, window_bounds = array<i64: 128, 128>}, {pipeline_mode = #tpu.pipeline_mode<synchronous>, transform_indices = @transform_4, window_bounds = array<i64: 1, 128>}, {transform_indices = @transform_5, window_bounds = array<i64: 8, 128>}, {transform_indices = @transform_6, window_bounds = array<i64: 8, 128>}]} {
    %c0 = arith.constant 0 : index
    %c0_0 = arith.constant 0 : index
    %0 = vector.load %arg1[%c0, %c0_0] : memref<8x128xbf16, #tpu.memory_space<vmem>>, vector<8x128xbf16>
    %c0_1 = arith.constant 0 : index
    %c0_2 = arith.constant 0 : index
    %1 = vector.load %arg2[%c0_1, %c0_2] : memref<128x128xbf16, #tpu.memory_space<vmem>>, vector<128x128xbf16>
    %cst = arith.constant dense<0.000000e+00> : vector<8x128xf32>
    %2 = tpu.matmul %0, %1, %cst {dimension_numbers = #tpu.dot_dimension_numbers<[1], [0], [0], [1], [0, 0, 1, 1], [], []>} : vector<8x128xbf16>, vector<128x128xbf16>, vector<8x128xf32> -> vector<8x128xf32>
    %c0_3 = arith.constant 0 : index
    %c0_4 = arith.constant 0 : index
    %3 = vector.load %arg3[%c0_3, %c0_4] : memref<1x128xf32, #tpu.memory_space<vmem>>, vector<1x128xf32>
    %4 = vector.broadcast %3 : vector<1x128xf32> to vector<8x128xf32>
    %5 = arith.addf %2, %4 : vector<8x128xf32>
    %cst_5 = arith.constant 2.000000e-01 : f32
    %6 = vector.broadcast %cst_5 : f32 to vector<8x128xf32>
    %7 = arith.mulf %6, %5 : vector<8x128xf32>
    %8 = arith.maximumf %5, %7 : vector<8x128xf32>
    %9 = arith.truncf %8 : vector<8x128xf32> to vector<8x128xbf16>
    %c0_6 = arith.constant 0 : index
    %c0_7 = arith.constant 0 : index
    %10 = vector.load %arg6[%c0_6, %c0_7] : memref<8x128xbf16, #tpu.memory_space<vmem>>, vector<8x128xbf16>
    tpu.vector_store %arg6[%c0_6, %c0_7], %9 {strides = array<i32>} : memref<8x128xbf16, #tpu.memory_space<vmem>>, vector<8x128xbf16>,
    %c0_8 = arith.constant 0 : index
    %c0_9 = arith.constant 0 : index
    %11 = vector.load %arg4[%c0_8, %c0_9] : memref<128x128xbf16, #tpu.memory_space<vmem>>, vector<128x128xbf16>
    %cst_10 = arith.constant dense<0.000000e+00> : vector<8x128xf32>
    %12 = tpu.matmul %9, %11, %cst_10 {dimension_numbers = #tpu.dot_dimension_numbers<[1], [0], [0], [1], [0, 0, 1, 1], [], []>} : vector<8x128xbf16>, vector<128x128xbf16>, vector<8x128xf32> -> vector<8x128xf32>
    %c0_11 = arith.constant 0 : index
    %c0_12 = arith.constant 0 : index
    %13 = vector.load %arg5[%c0_11, %c0_12] : memref<1x128xf32, #tpu.memory_space<vmem>>, vector<1x128xf32>
    %14 = vector.broadcast %13 : vector<1x128xf32> to vector<8x128xf32>
    %15 = arith.addf %12, %14 : vector<8x128xf32>
    %c0_13 = arith.constant 0 : index
    %c0_14 = arith.constant 0 : index
    %16 = vector.load %arg7[%c0_13, %c0_14] : memref<8x128xf32, #tpu.memory_space<vmem>>, vector<8x128xf32>
    tpu.vector_store %arg7[%c0_13, %c0_14], %15 {strides = array<i32>} : memref<8x128xf32, #tpu.memory_space<vmem>>, vector<8x128xf32>,
    return
  }
  func.func @transform_0(%arg0: i32) -> (i32, i32) {
    %c0_i32 = arith.constant 0 : i32
    %c0_i32_0 = arith.constant 0 : i32
    return %arg0, %c0_i32 : i32, i32
  }
  func.func @transform_1(%arg0: i32) -> (i32, i32) {
    %c0_i32 = arith.constant 0 : i32
    %c0_i32_0 = arith.constant 0 : i32
    %c0_i32_1 = arith.constant 0 : i32
    return %c0_i32, %c0_i32_0 : i32, i32
  }
  func.func @transform_2(%arg0: i32) -> (i32, i32) {
    %c0_i32 = arith.constant 0 : i32
    %c0_i32_0 = arith.constant 0 : i32
    %c0_i32_1 = arith.constant 0 : i32
    return %c0_i32, %c0_i32_0 : i32, i32
  }
  func.func @transform_3(%arg0: i32) -> (i32, i32) {
    %c0_i32 = arith.constant 0 : i32
    %c0_i32_0 = arith.constant 0 : i32
    %c0_i32_1 = arith.constant 0 : i32
    return %c0_i32, %c0_i32_0 : i32, i32
  }
  func.func @transform_4(%arg0: i32) -> (i32, i32) {
    %c0_i32 = arith.constant 0 : i32
    %c0_i32_0 = arith.constant 0 : i32
    %c0_i32_1 = arith.constant 0 : i32
    return %c0_i32, %c0_i32_0 : i32, i32
  }
  func.func @transform_5(%arg0: i32) -> (i32, i32) {
    %c0_i32 = arith.constant 0 : i32
    %c0_i32_0 = arith.constant 0 : i32
    return %arg0, %c0_i32 : i32, i32
  }
  func.func @transform_6(%arg0: i32) -> (i32, i32) {
    %c0_i32 = arith.constant 0 : i32
    %c0_i32_0 = arith.constant 0 : i32
    return %arg0, %c0_i32 : i32, i32
  }
}

</mosaic_0001>

<llo_original>
// kernel: discriminator_forward.1
$region0: #{discriminator_forward.1}
  #allocation0 [shape = 'u32[]', space=smem, size = 0x4, offset = 0x4, fixed_abs, tag = 'smem constant byte address 0x4 - core index']
  #allocation1 [shape = 'u32[72,128]{1,0:T(1,128)}', space=vmem, size = 0x9000, scoped, tag = 'internal scratch']
  %s0 = inlined_call_operand.vmem [shape: bf16[8,128], index: 0, kind: input, shape index: {}]
  %s1 = inlined_call_operand.vmem [shape: bf16[128,128], index: 1, kind: input, shape index: {}]
  %s2 = inlined_call_operand.vmem [shape: f32[1,128], index: 2, kind: input, shape index: {}]
  %s3 = inlined_call_operand.vmem [shape: bf16[128,128], index: 3, kind: input, shape index: {}]
  %s4 = inlined_call_operand.vmem [shape: f32[1,128], index: 4, kind: input, shape index: {}]
  %s5 = inlined_call_operand.hbm [shape: bf16[8,128], index: 5, kind: output, shape index: {0}]
  %s6 = inlined_call_operand.vmem [shape: f32[8,128], index: 6, kind: output, shape index: {1}]
  %7 = xla_tuple %s5, %s6
  %s8 = sld [smem:[#allocation0]]
  $region38: #{discriminator_forward.1} parent=0
    _
  %s10 = ssub.s32 1, %s8
  %s11 = scalar_select 0, %s10, %s8
  $region1: #{discriminator_forward.1} parent=0
    #allocation2 [shape = 'u8[2048]{0}', space=vmem, size = 0x800, scoped, tag = 'output window, operand 0, single buffered']
    #allocation3 [shape = 's32[1]{0}', space=sflag, size = 0x4, scoped, tag = 'scoped memory for discriminator_forward.1']
    %12 = vsyncpa [#allocation3], 0
    // Predicated region
    $region2: #{discriminator_forward.1} parent=1 // pred_check
      _
    $region3: #{discriminator_forward.1} parent=1 // pred_check_branch
      %14 = sbr.rel (0) target = $region5
    $region4: #{discriminator_forward.1} parent=1 // pred_region
      _
    $region5: #{discriminator_forward.1} parent=1 // pred_fallthru
      _
    // Predicated region
    $region6: #{discriminator_forward.1} parent=1 // pred_check
      _
    $region7: #{discriminator_forward.1} parent=1 // pred_check_branch
      %16 = sbr.rel (0) target = $region9
    $region8: #{discriminator_forward.1} parent=1 // pred_region
      _
    $region9: #{discriminator_forward.1} parent=1 // pred_fallthru
      _
    // Predicated region
    $region10: #{discriminator_forward.1} parent=1 // pred_check
      _
    $region11: #{discriminator_forward.1} parent=1 // pred_check_branch
      %18 = sbr.rel (0) target = $region13
    $region12: #{discriminator_forward.1} parent=1 // pred_region
      _
    $region13: #{discriminator_forward.1} parent=1 // pred_fallthru
      _
    // Predicated region
    $region14: #{discriminator_forward.1} parent=1 // pred_check
      _
    $region15: #{discriminator_forward.1} parent=1 // pred_check_branch
      %20 = sbr.rel (0) target = $region17
    $region16: #{discriminator_forward.1} parent=1 // pred_region
      _
    $region17: #{discriminator_forward.1} parent=1 // pred_fallthru
      _
    // Predicated region
    $region18: #{discriminator_forward.1} parent=1 // pred_check
      _
    $region19: #{discriminator_forward.1} parent=1 // pred_check_branch
      %22 = sbr.rel (0) target = $region21
    $region20: #{discriminator_forward.1} parent=1 // pred_region
      _
    $region21: #{discriminator_forward.1} parent=1 // pred_fallthru
      _
    %v23 = vld [vmem:[%s0] sm:$0xf]
    %v24 = vld [vmem:[%s1] sm:$0xf]
    %v25 = vld [vmem:[%s1 + $0x4] sm:$0xf]
    %v26 = vld [vmem:[%s1 + $0x8] sm:$0xf]
    %v27 = vld [vmem:[%s1 + $0xc] sm:$0xf]
    %v28 = vld [vmem:[%s1 + $0x10] sm:$0xf]
    %v29 = vld [vmem:[%s1 + $0x14] sm:$0xf]
    %v30 = vld [vmem:[%s1 + $0x18] sm:$0xf]
    %v31 = vld [vmem:[%s1 + $0x1c] sm:$0xf]
    %v32 = vld [vmem:[%s1 + $0x20] sm:$0xf]
    %v33 = vld [vmem:[%s1 + $0x24] sm:$0xf]
    %v34 = vld [vmem:[%s1 + $0x28] sm:$0xf]
    %v35 = vld [vmem:[%s1 + $0x2c] sm:$0xf]
    %v36 = vld [vmem:[%s1 + $0x30] sm:$0xf]
    %v37 = vld [vmem:[%s1 + $0x34] sm:$0xf]
    %v38 = vld [vmem:[%s1 + $0x38] sm:$0xf]
    %v39 = vld [vmem:[%s1 + $0x3c] sm:$0xf]
    %v40 = vld [vmem:[%s2] sm:$0x1]
    %v42 = vperm.slane %v40, 0
    %v60 = vunpack.c.l.b16 %v24
    %v61 = vunpack.c.l.b16 %v25
    %v62 = vunpack.c.l.b16 %v26
    %v63 = vunpack.c.l.b16 %v27
    %v64 = vunpack.c.l.b16 %v28
    %v65 = vunpack.c.l.b16 %v29
    %v66 = vunpack.c.l.b16 %v30
    %v67 = vunpack.c.l.b16 %v31
    %v68 = vunpack.c.l.b16 %v32
    %v69 = vunpack.c.l.b16 %v33
    %v70 = vunpack.c.l.b16 %v34
    %v71 = vunpack.c.l.b16 %v35
    %v72 = vunpack.c.l.b16 %v36
    %v73 = vunpack.c.l.b16 %v37
    %v74 = vunpack.c.l.b16 %v38
    %v75 = vunpack.c.l.b16 %v39
    %v76 = vpack.c.b16 %v61, %v60
    %v77 = vpack.c.b16 %v63, %v62
    %v78 = vpack.c.b16 %v65, %v64
    %v79 = vpack.c.b16 %v67, %v66
    %v80 = vpack.c.b16 %v69, %v68
    %v81 = vpack.c.b16 %v71, %v70
    %v82 = vpack.c.b16 %v73, %v72
    %v83 = vpack.c.b16 %v75, %v74
    %92 = vmatpush.bf16.msra.mxu0 %v83
    %93 = vmatpush.bf16.msra.mxu0 %v82
    %94 = vmatpush.bf16.msra.mxu0 %v81
    %95 = vmatpush.bf16.msra.mxu0 %v80
    %96 = vmatpush.bf16.msra.mxu0 %v79
    %97 = vmatpush.bf16.msra.mxu0 %v78
    %98 = vmatpush.bf16.msra.mxu0 %v77
    %99 = vmatpush.bf16.msra.mxu0 %v76
    %100 = vmatmul.bf16.gmra.mxu0 %v23
    %v101 = vpop.f32.mrf.mxu0
    %v102 = vadd.f32 %v42, %v101
    %v103 = vpop.f32.mrf.mxu0
    %104 = vdwg.mxu0
    %v105 = vmul.f32 %v102, 0.2
    %v106 = vmax.f32 %v102, %v105
    %v107 = vpack.c.bf16 %v106, %v106
    %108 = vst [vmem:[#allocation2] sm:$0xf] %v107
    %v109 = vld [vmem:[%s3] sm:$0xf]
    %v110 = vld [vmem:[%s3 + $0x4] sm:$0xf]
    %v111 = vld [vmem:[%s3 + $0x8] sm:$0xf]
    %v112 = vld [vmem:[%s3 + $0xc] sm:$0xf]
    %v113 = vld [vmem:[%s3 + $0x10] sm:$0xf]
    %v114 = vld [vmem:[%s3 + $0x14] sm:$0xf]
    %v115 = vld [vmem:[%s3 + $0x18] sm:$0xf]
    %v116 = vld [vmem:[%s3 + $0x1c] sm:$0xf]
    %v117 = vld [vmem:[%s3 + $0x20] sm:$0xf]
    %v118 = vld [vmem:[%s3 + $0x24] sm:$0xf]
    %v119 = vld [vmem:[%s3 + $0x28] sm:$0xf]
    %v120 = vld [vmem:[%s3 + $0x2c] sm:$0xf]
    %v121 = vld [vmem:[%s3 + $0x30] sm:$0xf]
    %v122 = vld [vmem:[%s3 + $0x34] sm:$0xf]
    %v123 = vld [vmem:[%s3 + $0x38] sm:$0xf]
    %v124 = vld [vmem:[%s3 + $0x3c] sm:$0xf]
    %v125 = vld [vmem:[%s4] sm:$0x1]
    %v127 = vperm.slane %v125, 0
    %v145 = vunpack.c.l.b16 %v109
    %v146 = vunpack.c.l.b16 %v110
    %v147 = vunpack.c.l.b16 %v111
    %v148 = vunpack.c.l.b16 %v112
    %v149 = vunpack.c.l.b16 %v113
    %v150 = vunpack.c.l.b16 %v114
    %v151 = vunpack.c.l.b16 %v115
    %v152 = vunpack.c.l.b16 %v116
    %v153 = vunpack.c.l.b16 %v117
    %v154 = vunpack.c.l.b16 %v118
    %v155 = vunpack.c.l.b16 %v119
    %v156 = vunpack.c.l.b16 %v120
    %v157 = vunpack.c.l.b16 %v121
    %v158 = vunpack.c.l.b16 %v122
    %v159 = vunpack.c.l.b16 %v123
    %v160 = vunpack.c.l.b16 %v124
    %v161 = vpack.c.b16 %v146, %v145
    %v162 = vpack.c.b16 %v148, %v147
    %v163 = vpack.c.b16 %v150, %v149
    %v164 = vpack.c.b16 %v152, %v151
    %v165 = vpack.c.b16 %v154, %v153
    %v166 = vpack.c.b16 %v156, %v155
    %v167 = vpack.c.b16 %v158, %v157
    %v168 = vpack.c.b16 %v160, %v159
    %177 = vmatpush.bf16.msra.mxu0 %v168
    %178 = vmatpush.bf16.msra.mxu0 %v167
    %179 = vmatpush.bf16.msra.mxu0 %v166
    %180 = vmatpush.bf16.msra.mxu0 %v165
    %181 = vmatpush.bf16.msra.mxu0 %v164
    %182 = vmatpush.bf16.msra.mxu0 %v163
    %183 = vmatpush.bf16.msra.mxu0 %v162
    %184 = vmatpush.bf16.msra.mxu0 %v161
    %185 = vmatmul.bf16.gmra.mxu0 %v107
    %v186 = vpop.f32.mrf.mxu0
    %v187 = vadd.f32 %v127, %v186
    %v188 = vpop.f32.mrf.mxu0
    %189 = vdwg.mxu0
    %190 = vst [vmem:[%s6] sm:$0xff] %v187
    // Predicated region
    $region22: #{discriminator_forward.1} parent=1 // pred_check
      _
    $region23: #{discriminator_forward.1} parent=1 // pred_check_branch
      %192 = sbr.rel (0) target = $region25
    $region24: #{discriminator_forward.1} parent=1 // pred_region
      %194 = vsyncadd [#allocation3], 0
      %s196 = sshll.u32 [#allocation2], 4
      %s197 = int_to_ptr.vmem [resolvable:$true] %s196
      %s198 = sshll.u32 %s5, 4
      %s199 = int_to_ptr.hbm [resolvable:$true] %s198
      %201 = dma.vmem_to_hbm [thread:$0]  %s197, 64, %s199, [#allocation3]
    $region25: #{discriminator_forward.1} parent=1 // pred_fallthru
      _
    // Predicated region
    $region26: #{discriminator_forward.1} parent=1 // pred_check
      _
    $region27: #{discriminator_forward.1} parent=1 // pred_check_branch
      %203 = sbr.rel (0) target = $region29
    $region28: #{discriminator_forward.1} parent=1 // pred_region
      _
    $region29: #{discriminator_forward.1} parent=1 // pred_fallthru
      _
    // Predicated region
    $region30: #{discriminator_forward.1} parent=1 // pred_check
      _
    $region31: #{discriminator_forward.1} parent=1 // pred_check_branch
      %205 = sbr.rel (0) target = $region33
    $region32: #{discriminator_forward.1} parent=1 // pred_region
      %207 = dma.done [#allocation3], 64
    $region33: #{discriminator_forward.1} parent=1 // pred_fallthru
      _
    // Predicated region
    $region34: #{discriminator_forward.1} parent=1 // pred_check
      _
    $region35: #{discriminator_forward.1} parent=1 // pred_check_branch
      %209 = sbr.rel (0) target = $region37
    $region36: #{discriminator_forward.1} parent=1 // pred_region
      _
    $region37: #{discriminator_forward.1} parent=1 // pred_fallthru
      _
    %210 = vsyncpa [#allocation3], 1

</llo_original>
